<compile_context>
chip_gen: v7x
topology: tpu7x:2x2x1
jax: 0.10.0
libtpu: 0.0.40
codegen_flags: <defaults>
</compile_context>

<pallas_src>
import functools

import jax
import jax.numpy as jnp
from jax import lax
from jax.experimental import pallas as pl
from jax.experimental.pallas import tpu as pltpu

FEAT_DIM = 2048                    # inception_v3 with fc=Identity -> 2048-d features
VMEM_LIMIT = 48 * 1024 * 1024      # explicit scoped-VMEM budget (safe on v5e/v6e/v7x)


def _round_up(x, m):
    return ((x + m - 1) // m) * m


# ----------------------------------------------------------------------------
# Fused encoder kernel: enc = [x1; x2] @ W + b   (stand-in for InceptionV3)
#   grid = (output column tiles "parallel", K-reduction tiles "arbitrary")
# ----------------------------------------------------------------------------
def _encode_kernel(x_ref, w_ref, b_ref, o_ref, acc_ref):
    # x_ref: (NT, tk) bf16   w_ref: (tk, tn) bf16   b_ref: (1, tn) f32
    # o_ref: (NT, tn) f32    acc_ref: (NT, tn) f32 scratch
    k = pl.program_id(1)

    @pl.when(k == 0)
    def _():
        acc_ref[...] = jnp.zeros_like(acc_ref)

    acc_ref[...] += jnp.dot(x_ref[...], w_ref[...],
                            preferred_element_type=jnp.float32)

    @pl.when(k == pl.num_programs(1) - 1)
    def _():
        o_ref[...] = acc_ref[...] + b_ref[...]


def encode(x_flat, w, b, *, tn=512, tk=512):
    """enc = x_flat @ W + b, bf16 MXU matmul with f32 accumulation."""
    NT, F = x_flat.shape
    Fw, D = w.shape
    assert Fw == F
    assert D % tn == 0 and tn % 128 == 0

    # Pad the contraction dim to a lane multiple and pick a tile that divides
    # it exactly so no padded weight bytes are streamed from HBM.
    Fp = _round_up(F, 128)
    if Fp % tk != 0:
        tk = 256 if Fp % 256 == 0 else 128
    if Fp != F:
        x_flat = jnp.pad(x_flat, ((0, 0), (0, Fp - F)))
        w = jnp.pad(w, ((0, Fp - F), (0, 0)))

    xb = x_flat.astype(jnp.bfloat16)
    wb = w.astype(jnp.bfloat16)
    b2 = b.reshape(1, D).astype(jnp.float32)

    return pl.pallas_call(
        _encode_kernel,
        out_shape=jax.ShapeDtypeStruct((NT, D), jnp.float32),
        grid_spec=pltpu.PrefetchScalarGridSpec(
            num_scalar_prefetch=0,
            grid=(D // tn, Fp // tk),
            in_specs=[
                pl.BlockSpec((NT, tk), lambda j, k: (0, k)),   # activations
                pl.BlockSpec((tk, tn), lambda j, k: (k, j)),   # weight tile
                pl.BlockSpec((1, tn), lambda j, k: (0, j)),    # bias tile
            ],
            out_specs=pl.BlockSpec((NT, tn), lambda j, k: (0, j)),
            scratch_shapes=[pltpu.VMEM((NT, tn), jnp.float32)],
        ),
        compiler_params=pltpu.CompilerParams(
            dimension_semantics=("parallel", "arbitrary"),
            vmem_limit_bytes=VMEM_LIMIT,
        ),
    )(xb, wb, b2)


# ----------------------------------------------------------------------------
# FID scoring kernel: reproduces FID._score_fid, reduced over the feature axis
# ----------------------------------------------------------------------------
def _fid_kernel(e1_ref, e2_ref, out_ref,
                g1, g2, r1c, r1l, r2c, r2l, d1, d2, ms, *, d_total):
    k = pl.program_id(0)

    @pl.when(k == 0)
    def _():
        g1[...] = jnp.zeros_like(g1)
        g2[...] = jnp.zeros_like(g2)
        r1c[...] = jnp.zeros_like(r1c)
        r1l[...] = jnp.zeros_like(r1l)
        r2c[...] = jnp.zeros_like(r2c)
        r2l[...] = jnp.zeros_like(r2l)
        d1[...] = jnp.zeros_like(d1)
        d2[...] = jnp.zeros_like(d2)
        ms[...] = jnp.zeros_like(ms)

    e1 = e1_ref[...]                       # (N, tkd) f32
    e2 = e2_ref[...]
    n = e1.shape[0]

    # Gram accumulation: G += E_chunk @ E_chunk^T  (contract the obs axis).
    dims = (((1,), (1,)), ((), ()))
    g1[...] += lax.dot_general(e1, e1, dims, preferred_element_type=jnp.float32)
    g2[...] += lax.dot_general(e2, e2, dims, preferred_element_type=jnp.float32)

    # Row sums in both layouts (column vector + lane-oriented row vector) so
    # the rank-1 mean correction r r^T needs no transpose at finalize time.
    ones_row = jnp.ones((1, e1.shape[1]), jnp.float32)
    r1c[...] += jnp.sum(e1, axis=1, keepdims=True)
    r2c[...] += jnp.sum(e2, axis=1, keepdims=True)
    r1l[...] += lax.dot_general(ones_row, e1, dims,
                                preferred_element_type=jnp.float32)
    r2l[...] += lax.dot_general(ones_row, e2, dims,
                                preferred_element_type=jnp.float32)

    # Row sums of squares: diag(G) accumulators for trace(S1) + trace(S2).
    d1[...] += jnp.sum(e1 * e1, axis=1, keepdims=True)
    d2[...] += jnp.sum(e2 * e2, axis=1, keepdims=True)

    # ||mu1 - mu2||^2 contribution of this feature chunk.
    mu_diff = (jnp.sum(e1, axis=0, keepdims=True)
               - jnp.sum(e2, axis=0, keepdims=True)) * (1.0 / n)
    ms[...] += jnp.sum(mu_diff * mu_diff, axis=1, keepdims=True)

    @pl.when(k == pl.num_programs(0) - 1)
    def _():
        inv_d = 1.0 / float(d_total)
        denom = 1.0 / (float(d_total) - 1.0)
        # torch.cov (rows are variables):  S = (E E^T - r r^T / D) / (D - 1)
        s1 = (g1[...] - r1c[...] * r1l[...] * inv_d) * denom
        s2 = (g2[...] - r2c[...] * r2l[...] * inv_d) * denom
        # trace(sqrt(S1 @ S2)) with ELEMENTWISE sqrt (as in the reference),
        # diagonal-only: (S1 @ S2)[i,i] = sum_k S1[i,k] S2[i,k] (S2 symmetric).
        diag_cross = jnp.sum(s1 * s2, axis=1, keepdims=True)       # (N, 1)
        tr_cross = jnp.sum(jnp.sqrt(diag_cross))
        # trace(S1) + trace(S2) from per-row sums of squares (no diag masks).
        tr1 = jnp.sum((d1[...] - r1c[...] * r1c[...] * inv_d) * denom)
        tr2 = jnp.sum((d2[...] - r2c[...] * r2c[...] * inv_d) * denom)
        p2 = tr1 + tr2 - 2.0 * tr_cross
        out_ref[0, 0] = jnp.sum(ms[...]) + p2


def fid_score(enc1, enc2, *, tkd=512):
    N, D = enc1.shape
    assert enc2.shape == (N, D), "sigma1 @ sigma2 requires equal batch sizes"
    if D % tkd != 0:
        tkd = 256 if D % 256 == 0 else 128
    assert D % tkd == 0

    kernel = functools.partial(_fid_kernel, d_total=D)
    out = pl.pallas_call(
        kernel,
        out_shape=jax.ShapeDtypeStruct((1, 1), jnp.float32),
        grid_spec=pltpu.PrefetchScalarGridSpec(
            num_scalar_prefetch=0,
            grid=(D // tkd,),
            in_specs=[
                pl.BlockSpec((N, tkd), lambda k: (0, k)),
                pl.BlockSpec((N, tkd), lambda k: (0, k)),
            ],
            out_specs=pl.BlockSpec((1, 1), lambda k: (0, 0),
                                   memory_space=pltpu.MemorySpace.SMEM),
            scratch_shapes=[
                pltpu.VMEM((N, N), jnp.float32),   # g1 = E1 E1^T
                pltpu.VMEM((N, N), jnp.float32),   # g2 = E2 E2^T
                pltpu.VMEM((N, 1), jnp.float32),   # r1c row sums (column vec)
                pltpu.VMEM((1, N), jnp.float32),   # r1l row sums (row vec)
                pltpu.VMEM((N, 1), jnp.float32),   # r2c
                pltpu.VMEM((1, N), jnp.float32),   # r2l
                pltpu.VMEM((N, 1), jnp.float32),   # d1 row sums of squares
                pltpu.VMEM((N, 1), jnp.float32),   # d2
                pltpu.VMEM((1, 1), jnp.float32),   # ms ||mu1-mu2||^2 partial
            ],
        ),
        compiler_params=pltpu.CompilerParams(
            dimension_semantics=("arbitrary",),
            vmem_limit_bytes=VMEM_LIMIT,
        ),
    )(enc1, enc2)
    return out[0, 0]


def fid_forward(x1, x2, w, b):
    """Equivalent of FID.forward(x1, x2) -> scalar FID score."""
    n1, n2 = x1.shape[0], x2.shape[0]
    # The reference's sigma1 @ sigma2 only shape-checks when N1 == N2.
    assert n1 == n2
    x1f = x1.reshape(n1, -1)
    x2f = x2.reshape(n2, -1)
    # Fused encode: one pallas_call for both batches -> W streamed once.
    enc = encode(jnp.concatenate([x1f, x2f], axis=0), w, b)
    return fid_score(enc[:n1], enc[n1:])


# ----------------------------------------------------------------------------
# Pure-JAX reference (direct _score_fid math; same bf16 MXU encoder numerics)
# ----------------------------------------------------------------------------
def _ref_fid(x1, x2, w, b):
    wb = w.astype(jnp.bfloat16)

    def enc(x):
        xf = x.reshape(x.shape[0], -1).astype(jnp.bfloat16)
        return jnp.dot(xf, wb, preferred_element_type=jnp.float32) + b

    e1, e2 = enc(x1), enc(x2)
    mu1, mu2 = e1.mean(0), e2.mean(0)
    c1 = e1 - e1.mean(1, keepdims=True)
    c2 = e2 - e2.mean(1, keepdims=True)
    D = e1.shape[1]
    s1 = (c1 @ c1.T) / (D - 1)
    s2 = (c2 @ c2.T) / (D - 1)
    covmean = jnp.sqrt(s1 @ s2)
    p2 = jnp.trace(s1 + s2 - 2.0 * covmean)
    return jnp.sum((mu1 - mu2) ** 2.0) + p2


if __name__ == "__main__":
    key = jax.random.PRNGKey(0)
    k1, k2, kw, kb = jax.random.split(key, 4)

    N, C, H, W = 4, 3, 16, 16   # small NCHW images (3-channel, inception-style)
    x1 = jax.random.normal(k1, (N, C, H, W), jnp.float32)
    x2 = jax.random.normal(k2, (N, C, H, W), jnp.float32)

    F = C * H * W
    w = 0.02 * jax.random.normal(kw, (F, FEAT_DIM), jnp.float32)
    b = 0.02 * jax.random.normal(kb, (FEAT_DIM,), jnp.float32)

    fid = jax.block_until_ready(fid_forward(x1, x2, w, b))
    ref = jax.block_until_ready(_ref_fid(x1, x2, w, b))

    assert jnp.allclose(fid, ref, rtol=1e-3, atol=1e-3, equal_nan=True), (
        float(fid),
        float(ref),
    )
    print("KERNEL_OK")
</pallas_src>

<mosaic_0001>
module attributes {stable_mosaic.version = 11 : i64} {
  func.func @_encode_kernel(%arg0: i32, %arg1: i32, %arg2: memref<8x256xbf16, #tpu.memory_space<vmem>>, %arg3: memref<256x512xbf16, #tpu.memory_space<vmem>>, %arg4: memref<1x512xf32, #tpu.memory_space<vmem>>, %arg5: memref<8x512xf32, #tpu.memory_space<vmem>>, %arg6: memref<8x512xf32, #tpu.memory_space<vmem>>) attributes {dimension_semantics = [#tpu.dimension_semantics<parallel>, #tpu.dimension_semantics<arbitrary>], iteration_bounds = array<i64: 4, 3>, scalar_prefetch = 0 : i64, scratch_operands = 1 : i64, tpu.core_type = #tpu.core_type<tc>, window_params = [{transform_indices = @transform_0, window_bounds = array<i64: 8, 256>}, {transform_indices = @transform_1, window_bounds = array<i64: 256, 512>}, {transform_indices = @transform_2, window_bounds = array<i64: 1, 512>}, {transform_indices = @transform_3, window_bounds = array<i64: 8, 512>}]} {
    %c0_i32 = arith.constant 0 : i32
    %0 = arith.cmpi eq, %arg1, %c0_i32 : i32
    %1 = arith.extui %0 : i1 to i32
    %c0_i32_0 = arith.constant 0 : i32
    %2 = arith.cmpi ne, %1, %c0_i32_0 : i32
    scf.if %2 {
      %cst_9 = arith.constant 0.000000e+00 : f32
      %12 = vector.broadcast %cst_9 : f32 to vector<8x512xf32>
      %c0_10 = arith.constant 0 : index
      %c0_11 = arith.constant 0 : index
      %13 = vector.load %arg6[%c0_10, %c0_11] : memref<8x512xf32, #tpu.memory_space<vmem>>, vector<8x512xf32>
      tpu.vector_store %arg6[%c0_10, %c0_11], %12 {strides = array<i32>} : memref<8x512xf32, #tpu.memory_space<vmem>>, vector<8x512xf32>,
    } else {
    }
    %c0 = arith.constant 0 : index
    %c0_1 = arith.constant 0 : index
    %3 = vector.load %arg6[%c0, %c0_1] : memref<8x512xf32, #tpu.memory_space<vmem>>, vector<8x512xf32>
    %c0_2 = arith.constant 0 : index
    %c0_3 = arith.constant 0 : index
    %4 = vector.load %arg2[%c0_2, %c0_3] : memref<8x256xbf16, #tpu.memory_space<vmem>>, vector<8x256xbf16>
    %c0_4 = arith.constant 0 : index
    %c0_5 = arith.constant 0 : index
    %5 = vector.load %arg3[%c0_4, %c0_5] : memref<256x512xbf16, #tpu.memory_space<vmem>>, vector<256x512xbf16>
    %cst = arith.constant dense<0.000000e+00> : vector<8x512xf32>
    %6 = tpu.matmul %4, %5, %cst {dimension_numbers = #tpu.dot_dimension_numbers<[1], [0], [0], [1], [0, 0, 1, 1], [], []>} : vector<8x256xbf16>, vector<256x512xbf16>, vector<8x512xf32> -> vector<8x512xf32>
    %7 = arith.addf %3, %6 : vector<8x512xf32>
    %c0_6 = arith.constant 0 : index
    %c0_7 = arith.constant 0 : index
    %8 = vector.load %arg6[%c0_6, %c0_7] : memref<8x512xf32, #tpu.memory_space<vmem>>, vector<8x512xf32>
    tpu.vector_store %arg6[%c0_6, %c0_7], %7 {strides = array<i32>} : memref<8x512xf32, #tpu.memory_space<vmem>>, vector<8x512xf32>,
    %c2_i32 = arith.constant 2 : i32
    %9 = arith.cmpi eq, %arg1, %c2_i32 : i32
    %10 = arith.extui %9 : i1 to i32
    %c0_i32_8 = arith.constant 0 : i32
    %11 = arith.cmpi ne, %10, %c0_i32_8 : i32
    scf.if %11 {
      %c0_9 = arith.constant 0 : index
      %c0_10 = arith.constant 0 : index
      %12 = vector.load %arg6[%c0_9, %c0_10] : memref<8x512xf32, #tpu.memory_space<vmem>>, vector<8x512xf32>
      %c0_11 = arith.constant 0 : index
      %c0_12 = arith.constant 0 : index
      %13 = vector.load %arg4[%c0_11, %c0_12] : memref<1x512xf32, #tpu.memory_space<vmem>>, vector<1x512xf32>
      %14 = vector.broadcast %13 : vector<1x512xf32> to vector<8x512xf32>
      %15 = arith.addf %12, %14 : vector<8x512xf32>
      %c0_13 = arith.constant 0 : index
      %c0_14 = arith.constant 0 : index
      %16 = vector.load %arg5[%c0_13, %c0_14] : memref<8x512xf32, #tpu.memory_space<vmem>>, vector<8x512xf32>
      tpu.vector_store %arg5[%c0_13, %c0_14], %15 {strides = array<i32>} : memref<8x512xf32, #tpu.memory_space<vmem>>, vector<8x512xf32>,
    } else {
    }
    return
  }
  func.func @transform_0(%arg0: i32, %arg1: i32) -> (i32, i32) {
    %c0_i32 = arith.constant 0 : i32
    %c0_i32_0 = arith.constant 0 : i32
    return %c0_i32, %arg1 : i32, i32
  }
  func.func @transform_1(%arg0: i32, %arg1: i32) -> (i32, i32) {
    %c0_i32 = arith.constant 0 : i32
    return %arg1, %arg0 : i32, i32
  }
  func.func @transform_2(%arg0: i32, %arg1: i32) -> (i32, i32) {
    %c0_i32 = arith.constant 0 : i32
    %c0_i32_0 = arith.constant 0 : i32
    return %c0_i32, %arg0 : i32, i32
  }
  func.func @transform_3(%arg0: i32, %arg1: i32) -> (i32, i32) {
    %c0_i32 = arith.constant 0 : i32
    %c0_i32_0 = arith.constant 0 : i32
    return %c0_i32, %arg0 : i32, i32
  }
}

</mosaic_0001>

<llo_original>
// kernel: tpu_custom_call.1
$region0: #{tpu_custom_call.1}
  #allocation0 [shape = 'u32[]', space=smem, size = 0x4, offset = 0x4, fixed_abs, tag = 'smem constant byte address 0x4 - core index']
  #allocation1 [shape = 'u32[144,128]{1,0:T(1,128)}', space=vmem, size = 0x12000, scoped, tag = 'internal scratch']
  #allocation2 [shape = 'f32[8,512]{1,0:T(8,128)}', space=vmem, size = 0x4000, scoped, tag = 'scratch operand']
  %s0 = inlined_call_operand.hbm [shape: bf16[8,768], index: 0, kind: input, shape index: {}]
  %s1 = inlined_call_operand.hbm [shape: bf16[768,2048], index: 1, kind: input, shape index: {}]
  %s2 = inlined_call_operand.hbm [shape: f32[1,2048], index: 2, kind: input, shape index: {}]
  %s3 = inlined_call_operand.hbm [shape: f32[8,2048], index: 3, kind: output, shape index: {}]
  %s4 = sld [smem:[#allocation0]]
  $region65: #{tpu_custom_call.1} parent=0
    _
  %s6 = ssub.s32 1, %s4
  %s7 = scalar_select 0, %s6, %s4
  $region1: #{tpu_custom_call.1} parent=0
    #allocation3 [shape = 'u8[8192]{0}', space=vmem, size = 0x2000, scoped, tag = 'input window, operand 0']
    #allocation4 [shape = 's32[2]{0}', space=sflag, size = 0x8, scoped, tag = 'scoped memory for tpu_custom_call.1']
    #allocation5 [shape = 's32[2]{0}', space=sflag, size = 0x8, scoped, tag = 'scoped memory for tpu_custom_call.1']
    #allocation6 [shape = 'u8[524288]{0}', space=vmem, size = 0x80000, scoped, tag = 'input window, operand 1']
    #allocation7 [shape = 's32[2]{0}', space=sflag, size = 0x8, scoped, tag = 'scoped memory for tpu_custom_call.1']
    #allocation8 [shape = 'u8[4096]{0}', space=vmem, size = 0x1000, scoped, tag = 'input window, operand 2']
    #allocation9 [shape = 'u8[32768]{0}', space=vmem, size = 0x8000, scoped, tag = 'output window, operand 0']
    %8 = vsyncpa [#allocation4], 0
    %s9 = scalar_lea.sflag [#allocation4], 1
    %10 = vsyncpa %s9, 0
    %11 = vsyncpa [#allocation7], 0
    %s12 = scalar_lea.sflag [#allocation7], 1
    %13 = vsyncpa %s12, 0
    %14 = vsyncpa [#allocation5], 0
    %s15 = scalar_lea.sflag [#allocation5], 1
    %16 = vsyncpa %s15, 0
    loop: start=0, step=1, limit=14
    $region2: #{tpu_custom_call.1} parent=1 // loop_pre_header
      _
    $region3: #{tpu_custom_call.1} parent=1 // loop_header
      %s18 = sphi 0, %s22
      %p19 = scmp.ge.s32.totalorder %s18, 14
      %s25 = sphi 0, %s37
      %s26 = sphi 0, %s33
      %s27 = sphi 0, %s25
      %s28 = sphi 0, %s26
      %s29 = sphi 0, %s27
      %s30 = sphi 0, %s28
      %s40 = sphi 0, %s42
      %s43 = sphi 0, %s40
      %s44 = sphi 0, %s43
      %s60 = sphi 0, %s44
      %s68 = sphi 0, %s70
      %s71 = sphi 0, %s68
      %s72 = sphi 0, %s71
      %s88 = sphi 0, %s72
      %s94 = sphi 0, %s96
      %s97 = sphi 0, %s94
      %s98 = sphi 0, %s97
      %s114 = sphi 0, %s98
      %s120 = sphi 0, %s122
      %s123 = sphi 0, %s120
      %s124 = sphi 0, %s123
      %s140 = sphi 0, %s124
    $region4: #{tpu_custom_call.1} parent=1 // loop_header_branch
      %21 = sbr.rel (%p19) target = $region8
    $region5: #{tpu_custom_call.1} parent=1 // loop_body
      %s23 = ssub.s32 %s18, 1
      %s24 = ssub.s32 %s18, 2
      %s31 = sadd.s32 1, %s26
      %p32 = scmp.ge.s32.totalorder %s31, 3
      %s33 = scalar_select %p32, 0, %s31
      %s34 = sadd.s32 1, %s25
      %s35 = scalar_select %p32, %s34, %s25
      %p36 = scmp.ge.s32.totalorder %s35, 4
      %s37 = scalar_select %p36, 0, %s35
      %s38 = ssub.s32 %s26, %s33
      %p39 = scmp.eq.s32.totalorder %s38, 0
      %s41 = sadd.s32 %s40, 1
      %s42 = scalar_select %p39, %s40, %s41
      %p45 = pneg %p39
      %p46 = scmp.eq.s32.totalorder %s18, 11
      %p47 = por %p45, %p46
      %p48 = scmp.ne.s32.totalorder %s40, %s43
      %p49 = scmp.eq.s32.totalorder %s18, 0
      %p50 = por %p48, %p49
      %p51 = scmp.ne.s32.totalorder %s40, %s43
      %p52 = scmp.eq.s32.totalorder %s23, 11
      %p53 = por %p51, %p52
      %p54 = scmp.ne.s32.totalorder %s43, %s44
      %p55 = scmp.eq.s32.totalorder %s23, 0
      %p56 = por %p54, %p55
      %p57 = scmp.ne.s32.totalorder %s43, %s44
      %p58 = scmp.eq.s32.totalorder %s24, 11
      %p59 = por %p57, %p58
      %p61 = scmp.ne.s32.totalorder %s44, %s60
      %p62 = scmp.eq.s32.totalorder %s24, 0
      %p63 = por %p61, %p62
      %s64 = ssub.s32 %s26, %s33
      %s65 = ssub.s32 %s25, %s37
      %s66 = sor.u32 %s64, %s65
      %p67 = scmp.eq.s32.totalorder %s66, 0
      %s69 = sadd.s32 %s68, 1
      %s70 = scalar_select %p67, %s68, %s69
      %p73 = pneg %p67
      %p74 = scmp.eq.s32.totalorder %s18, 11
      %p75 = por %p73, %p74
      %p76 = scmp.ne.s32.totalorder %s68, %s71
      %p77 = scmp.eq.s32.totalorder %s18, 0
      %p78 = por %p76, %p77
      %p79 = scmp.ne.s32.totalorder %s68, %s71
      %p80 = scmp.eq.s32.totalorder %s23, 11
      %p81 = por %p79, %p80
      %p82 = scmp.ne.s32.totalorder %s71, %s72
      %p83 = scmp.eq.s32.totalorder %s23, 0
      %p84 = por %p82, %p83
      %p85 = scmp.ne.s32.totalorder %s71, %s72
      %p86 = scmp.eq.s32.totalorder %s24, 11
      %p87 = por %p85, %p86
      %p89 = scmp.ne.s32.totalorder %s72, %s88
      %p90 = scmp.eq.s32.totalorder %s24, 0
      %p91 = por %p89, %p90
      %s92 = ssub.s32 %s25, %s37
      %p93 = scmp.eq.s32.totalorder %s92, 0
      %s95 = sadd.s32 %s94, 1
      %s96 = scalar_select %p93, %s94, %s95
      %p99 = pneg %p93
      %p100 = scmp.eq.s32.totalorder %s18, 11
      %p101 = por %p99, %p100
      %p102 = scmp.ne.s32.totalorder %s94, %s97
      %p103 = scmp.eq.s32.totalorder %s18, 0
      %p104 = por %p102, %p103
      %p105 = scmp.ne.s32.totalorder %s94, %s97
      %p106 = scmp.eq.s32.totalorder %s23, 11
      %p107 = por %p105, %p106
      %p108 = scmp.ne.s32.totalorder %s97, %s98
      %p109 = scmp.eq.s32.totalorder %s23, 0
      %p110 = por %p108, %p109
      %p111 = scmp.ne.s32.totalorder %s97, %s98
      %p112 = scmp.eq.s32.totalorder %s24, 11
      %p113 = por %p111, %p112
      %p115 = scmp.ne.s32.totalorder %s98, %s114
      %p116 = scmp.eq.s32.totalorder %s24, 0
      %p117 = por %p115, %p116
      %s118 = ssub.s32 %s25, %s37
      %p119 = scmp.eq.s32.totalorder %s118, 0
      %s121 = sadd.s32 %s120, 1
      %s122 = scalar_select %p119, %s120, %s121
      %p125 = pneg %p119
      %p126 = scmp.eq.s32.totalorder %s18, 11
      %p127 = por %p125, %p126
      %p128 = scmp.ne.s32.totalorder %s120, %s123
      %p129 = scmp.eq.s32.totalorder %s18, 0
      %p130 = por %p128, %p129
      %p131 = scmp.ne.s32.totalorder %s120, %s123
      %p132 = scmp.eq.s32.totalorder %s23, 11
      %p133 = por %p131, %p132
      %p134 = scmp.ne.s32.totalorder %s123, %s124
      %p135 = scmp.eq.s32.totalorder %s23, 0
      %p136 = por %p134, %p135
      %p137 = scmp.ne.s32.totalorder %s123, %s124
      %p138 = scmp.eq.s32.totalorder %s24, 11
      %p139 = por %p137, %p138
      %p141 = scmp.ne.s32.totalorder %s124, %s140
      %p142 = scmp.eq.s32.totalorder %s24, 0
      %p143 = por %p141, %p142
      %p144 = scmp.le.s32.totalorder 1, %s18
      %p145 = scmp.lt.s32.totalorder %s18, 13
      %p146 = pnand %p144, %p145
      %p147 = pneg %p146
      // Predicated region
      $region9: #{tpu_custom_call.1} parent=5 // pred_check
        _
      $region10: #{tpu_custom_call.1} parent=5 // pred_check_branch
        %149 = sbr.rel (%p146) target = $region12
      $region11: #{tpu_custom_call.1} parent=5 // pred_region
        %s150 = ssub.s32 %s18, 1
      $region12: #{tpu_custom_call.1} parent=5 // pred_fallthru
        _
      %p151 = scmp.lt.s32.totalorder %s18, 12
      // Predicated region
      $region13: #{tpu_custom_call.1} parent=5 // pred_check
        %p152 = pneg %p151
      $region14: #{tpu_custom_call.1} parent=5 // pred_check_branch
        %154 = sbr.rel (%p152) target = $region16
      $region15: #{tpu_custom_call.1} parent=5 // pred_region
        // Predicated region
        $region17: #{tpu_custom_call.1} parent=15 // pred_check
          %p155 = pneg %p50
        $region18: #{tpu_custom_call.1} parent=15 // pred_check_branch
          %157 = sbr.rel (%p155) target = $region20
        $region19: #{tpu_custom_call.1} parent=15 // pred_region
          %s158 = sand.u32 %s40, 1
          %s159 = scalar_lea.sflag [#allocation4], %s158
          %s160 = sand.u32 %s40, 1
          %s161 = smul.addr %s160, 8
          %s162 = scalar_lea.vmem [#allocation3], %s161
          %s163 = smul.u32 2, %s26
          %s165 = ssub.s32 128, 128
          %166 = vsyncadd %s159, %s165
          %s167 = smul.addr %s163, 64
          %s168 = scalar_lea.hbm %s0, %s167
          %s170 = sshll.u32 %s162, 4
          %s171 = int_to_ptr.vmem [resolvable:$true] %s170
          %173 = dma.hbm_to_vmem [thread:$0]  %s168, 128, %s171, %s159
        $region20: #{tpu_custom_call.1} parent=15 // pred_fallthru
          _
        // Predicated region
        $region21: #{tpu_custom_call.1} parent=15 // pred_check
          %p174 = pneg %p78
        $region22: #{tpu_custom_call.1} parent=15 // pred_check_branch
          %176 = sbr.rel (%p174) target = $region24
        $region23: #{tpu_custom_call.1} parent=15 // pred_region
          %s177 = sand.u32 %s18, 1
          %s178 = scalar_lea.sflag [#allocation7], %s177
          %s179 = sand.u32 %s68, 1
          %s180 = smul.addr %s179, 512
          %s181 = scalar_lea.vmem [#allocation6], %s180
          %s182 = smul.u32 32, %s26
          %s183 = smul.u32 4, %s25
          %s185 = ssub.s32 8192, 8192
          %186 = vsyncadd %s178, %s185
          %s187 = smul.addr %s182, 16
          %s188 = sadd.s32 %s183, %s187
          %s189 = smul.addr %s188, 64
          %s190 = scalar_lea.hbm %s1, %s189
          %s191 = sshll.u32 %s181, 4
          %s192 = int_to_ptr.vmem [resolvable:$true] %s191
          %197 = dma.hbm_to_vmem [thread:$0]  %s190, 8192, %s192, %s178, 1024, 256, 16
        $region24: #{tpu_custom_call.1} parent=15 // pred_fallthru
          _
        // Predicated region
        $region25: #{tpu_custom_call.1} parent=15 // pred_check
          %p198 = pneg %p104
        $region26: #{tpu_custom_call.1} parent=15 // pred_check_branch
          %200 = sbr.rel (%p198) target = $region28
        $region27: #{tpu_custom_call.1} parent=15 // pred_region
          %s201 = sand.u32 %s18, 1
          %s202 = scalar_lea.sflag [#allocation7], %s201
          %s203 = sand.u32 %s94, 1
          %s204 = smul.addr %s203, 4
          %s205 = scalar_lea.vmem [#allocation8], %s204
          %s206 = smul.u32 4, %s25
          %s208 = ssub.s32 64, 64
          %209 = vsyncadd %s202, %s208
          %s210 = smul.addr %s206, 16
          %s211 = scalar_lea.hbm %s2, %s210
          %s213 = sshll.u32 %s205, 4
          %s214 = int_to_ptr.vmem [resolvable:$true] %s213
          %216 = dma.hbm_to_vmem [thread:$0]  %s211, 64, %s214, %s202
        $region28: #{tpu_custom_call.1} parent=15 // pred_fallthru
          _
      $region16: #{tpu_custom_call.1} parent=5 // pred_fallthru
        _
      %p217 = scmp.le.s32.totalorder 1, %s18
      %p218 = scmp.lt.s32.totalorder %s18, 13
      %p219 = pnand %p217, %p218
      %p220 = pneg %p219
      // Predicated region
      $region29: #{tpu_custom_call.1} parent=5 // pred_check
        _
      $region30: #{tpu_custom_call.1} parent=5 // pred_check_branch
        %222 = sbr.rel (%p219) target = $region32
      $region31: #{tpu_custom_call.1} parent=5 // pred_region
        %s223 = ssub.s32 %s18, 1
        %s224 = sand.u32 %s43, 1
        %s225 = scalar_lea.sflag [#allocation4], %s224
        %s226 = sand.u32 %s43, 1
        %s227 = smul.addr %s226, 8
        %s228 = scalar_lea.vmem [#allocation3], %s227
        // Predicated region
        $region33: #{tpu_custom_call.1} parent=31 // pred_check
          %p229 = pneg %p56
        $region34: #{tpu_custom_call.1} parent=31 // pred_check_branch
          %231 = sbr.rel (%p229) target = $region36
        $region35: #{tpu_custom_call.1} parent=31 // pred_region
          %232 = dma.done %s225, 128
        $region36: #{tpu_custom_call.1} parent=31 // pred_fallthru
          _
        %s233 = sand.u32 %s23, 1
        %s234 = scalar_lea.sflag [#allocation7], %s233
        %s235 = sand.u32 %s71, 1
        %s236 = smul.addr %s235, 512
        %s237 = scalar_lea.vmem [#allocation6], %s236
        // Predicated region
        $region37: #{tpu_custom_call.1} parent=31 // pred_check
          %p238 = pneg %p84
        $region38: #{tpu_custom_call.1} parent=31 // pred_check_branch
          %240 = sbr.rel (%p238) target = $region40
        $region39: #{tpu_custom_call.1} parent=31 // pred_region
          %241 = dma.done %s234, 8192
        $region40: #{tpu_custom_call.1} parent=31 // pred_fallthru
          _
        %s242 = sand.u32 %s23, 1
        %s243 = scalar_lea.sflag [#allocation7], %s242
        %s244 = sand.u32 %s97, 1
        %s245 = smul.addr %s244, 4
        %s246 = scalar_lea.vmem [#allocation8], %s245
        // Predicated region
        $region41: #{tpu_custom_call.1} parent=31 // pred_check
          %p247 = pneg %p110
        $region42: #{tpu_custom_call.1} parent=31 // pred_check_branch
          %249 = sbr.rel (%p247) target = $region44
        $region43: #{tpu_custom_call.1} parent=31 // pred_region
          %250 = dma.done %s243, 64
        $region44: #{tpu_custom_call.1} parent=31 // pred_fallthru
          _
        %s251 = sand.u32 %s43, 1
        %s252 = scalar_lea.sflag [#allocation4], %s251
        %s253 = sand.u32 %s43, 1
        %s254 = smul.addr %s253, 8
        %s255 = scalar_lea.vmem [#allocation3], %s254
        %p256 = pneg %p56
        %p257 = pneg %p53
        %s258 = sand.u32 %s23, 1
        %s259 = scalar_lea.sflag [#allocation7], %s258
        %s260 = sand.u32 %s71, 1
        %s261 = smul.addr %s260, 512
        %s262 = scalar_lea.vmem [#allocation6], %s261
        %p263 = pneg %p84
        %p264 = pneg %p81
        %s265 = sand.u32 %s23, 1
        %s266 = scalar_lea.sflag [#allocation7], %s265
        %s267 = sand.u32 %s97, 1
        %s268 = smul.addr %s267, 4
        %s269 = scalar_lea.vmem [#allocation8], %s268
        %p270 = pneg %p110
        %p271 = pneg %p107
        %p272 = pneg %p136
        %p273 = pneg %p133
        %s274 = sand.u32 %s123, 1
        %s275 = scalar_lea.sflag [#allocation5], %s274
        %s276 = sand.u32 %s123, 1
        %s277 = smul.addr %s276, 32
        %s278 = scalar_lea.vmem [#allocation9], %s277
        %s279 = smul.u32 2, %s28
        %s280 = smul.u32 32, %s28
        %s281 = smul.u32 4, %s27
        %s282 = smul.u32 4, %s27
        %s283 = smul.u32 4, %s27
        %p284 = scmp.eq.s32.totalorder %s28, 0
        // Predicated region
        $region45: #{tpu_custom_call.1} parent=31 // pred_check
          %p285 = pneg %p284
        $region46: #{tpu_custom_call.1} parent=31 // pred_check_branch
          %287 = sbr.rel (%p285) target = $region48
        $region47: #{tpu_custom_call.1} parent=31 // pred_region
          %288 = vst [vmem:[#allocation2] sm:$0xff] 0.0
          %289 = vst [vmem:[#allocation2 + $0x8] sm:$0xff] 0.0
          %290 = vst [vmem:[#allocation2 + $0x10] sm:$0xff] 0.0
          %291 = vst [vmem:[#allocation2 + $0x18] sm:$0xff] 0.0
        $region48: #{tpu_custom_call.1} parent=31 // pred_fallthru
          _
        %v292 = vld [vmem:[#allocation2] sm:$0xff]
        %v293 = vld [vmem:[#allocation2 + $0x8] sm:$0xff]
        %v294 = vld [vmem:[#allocation2 + $0x10] sm:$0xff]
        %v295 = vld [vmem:[#allocation2 + $0x18] sm:$0xff]
        %v296 = vld [vmem:[%s228] sm:$0xff]
        %v297 = vld [vmem:[%s237] sm:$0xff]
        %v298 = vld [vmem:[%s237 + $0x8] sm:$0xff]
        %v299 = vld [vmem:[%s237 + $0x10] sm:$0xff]
        %v300 = vld [vmem:[%s237 + $0x18] sm:$0xff]
        %v301 = vld [vmem:[%s237 + $0x20] sm:$0xff]
        %v302 = vld [vmem:[%s237 + $0x28] sm:$0xff]
        %v303 = vld [vmem:[%s237 + $0x30] sm:$0xff]
        %v304 = vld [vmem:[%s237 + $0x38] sm:$0xff]
        %v305 = vld [vmem:[%s237 + $0x40] sm:$0xff]
        %v306 = vld [vmem:[%s237 + $0x48] sm:$0xff]
        %v307 = vld [vmem:[%s237 + $0x50] sm:$0xff]
        %v308 = vld [vmem:[%s237 + $0x58] sm:$0xff]
        %v309 = vld [vmem:[%s237 + $0x60] sm:$0xff]
        %v310 = vld [vmem:[%s237 + $0x68] sm:$0xff]
        %v311 = vld [vmem:[%s237 + $0x70] sm:$0xff]
        %v312 = vld [vmem:[%s237 + $0x78] sm:$0xff]
        %v313 = vld [vmem:[%s237 + $0x80] sm:$0xff]
        %v314 = vld [vmem:[%s237 + $0x88] sm:$0xff]
        %v315 = vld [vmem:[%s237 + $0x90] sm:$0xff]
        %v316 = vld [vmem:[%s237 + $0x98] sm:$0xff]
        %v317 = vld [vmem:[%s237 + $0xa0] sm:$0xff]
        %v318 = vld [vmem:[%s237 + $0xa8] sm:$0xff]
        %v319 = vld [vmem:[%s237 + $0xb0] sm:$0xff]
        %v320 = vld [vmem:[%s237 + $0xb8] sm:$0xff]
        %v321 = vld [vmem:[%s237 + $0xc0] sm:$0xff]
        %v322 = vld [vmem:[%s237 + $0xc8] sm:$0xff]
        %v323 = vld [vmem:[%s237 + $0xd0] sm:$0xff]
        %v324 = vld [vmem:[%s237 + $0xd8] sm:$0xff]
        %v325 = vld [vmem:[%s237 + $0xe0] sm:$0xff]
        %v326 = vld [vmem:[%s237 + $0xe8] sm:$0xff]
        %v327 = vld [vmem:[%s237 + $0xf0] sm:$0xff]
        %v328 = vld [vmem:[%s237 + $0xf8] sm:$0xff]
        %v329 = vld [vmem:[%s237 + $0x100] sm:$0xff]
        %v330 = vld [vmem:[%s237 + $0x108] sm:$0xff]
        %v331 = vld [vmem:[%s237 + $0x110] sm:$0xff]
        %v332 = vld [vmem:[%s237 + $0x118] sm:$0xff]
        %v333 = vld [vmem:[%s237 + $0x120] sm:$0xff]
        %v334 = vld [vmem:[%s237 + $0x128] sm:$0xff]
        %v335 = vld [vmem:[%s237 + $0x130] sm:$0xff]
        %v336 = vld [vmem:[%s237 + $0x138] sm:$0xff]
        %v337 = vld [vmem:[%s237 + $0x140] sm:$0xff]
        %v338 = vld [vmem:[%s237 + $0x148] sm:$0xff]
        %v339 = vld [vmem:[%s237 + $0x150] sm:$0xff]
        %v340 = vld [vmem:[%s237 + $0x158] sm:$0xff]
        %v341 = vld [vmem:[%s237 + $0x160] sm:$0xff]
        %v342 = vld [vmem:[%s237 + $0x168] sm:$0xff]
        %v343 = vld [vmem:[%s237 + $0x170] sm:$0xff]
        %v344 = vld [vmem:[%s237 + $0x178] sm:$0xff]
        %v345 = vld [vmem:[%s237 + $0x180] sm:$0xff]
        %v346 = vld [vmem:[%s237 + $0x188] sm:$0xff]
        %v347 = vld [vmem:[%s237 + $0x190] sm:$0xff]
        %v348 = vld [vmem:[%s237 + $0x198] sm:$0xff]
        %v349 = vld [vmem:[%s237 + $0x1a0] sm:$0xff]
        %v350 = vld [vmem:[%s237 + $0x1a8] sm:$0xff]
        %v351 = vld [vmem:[%s237 + $0x1b0] sm:$0xff]
        %v352 = vld [vmem:[%s237 + $0x1b8] sm:$0xff]
        %v353 = vld [vmem:[%s237 + $0x1c0] sm:$0xff]
        %v354 = vld [vmem:[%s237 + $0x1c8] sm:$0xff]
        %v355 = vld [vmem:[%s237 + $0x1d0] sm:$0xff]
        %v356 = vld [vmem:[%s237 + $0x1d8] sm:$0xff]
        %v357 = vld [vmem:[%s237 + $0x1e0] sm:$0xff]
        %v358 = vld [vmem:[%s237 + $0x1e8] sm:$0xff]
        %v359 = vld [vmem:[%s237 + $0x1f0] sm:$0xff]
        %v360 = vld [vmem:[%s237 + $0x1f8] sm:$0xff]
        %v362 = vunpack.c.l.b16 %v296
        %v363 = vunpack.c.h.b16 %v296
        %v364 = vpack.c.b16 %v362, %v362
        %v365 = vpack.c.b16 %v363, %v363
        %v432 = vunpack.c.l.b16 %v297
        %v433 = vunpack.c.h.b16 %v297
        %v434 = vunpack.c.l.b16 %v298
        %v435 = vunpack.c.h.b16 %v298
        %v436 = vunpack.c.l.b16 %v299
        %v437 = vunpack.c.h.b16 %v299
        %v438 = vunpack.c.l.b16 %v300
        %v439 = vunpack.c.h.b16 %v300
        %v440 = vunpack.c.l.b16 %v301
        %v441 = vunpack.c.h.b16 %v301
        %v442 = vunpack.c.l.b16 %v302
        %v443 = vunpack.c.h.b16 %v302
        %v444 = vunpack.c.l.b16 %v303
        %v445 = vunpack.c.h.b16 %v303
        %v446 = vunpack.c.l.b16 %v304
        %v447 = vunpack.c.h.b16 %v304
        %v448 = vunpack.c.l.b16 %v305
        %v449 = vunpack.c.h.b16 %v305
        %v450 = vunpack.c.l.b16 %v306
        %v451 = vunpack.c.h.b16 %v306
        %v452 = vunpack.c.l.b16 %v307
        %v453 = vunpack.c.h.b16 %v307
        %v454 = vunpack.c.l.b16 %v308
        %v455 = vunpack.c.h.b16 %v308
        %v456 = vunpack.c.l.b16 %v309
        %v457 = vunpack.c.h.b16 %v309
        %v458 = vunpack.c.l.b16 %v310
        %v459 = vunpack.c.h.b16 %v310
        %v460 = vunpack.c.l.b16 %v311
        %v461 = vunpack.c.h.b16 %v311
        %v462 = vunpack.c.l.b16 %v312
        %v463 = vunpack.c.h.b16 %v312
        %v464 = vunpack.c.l.b16 %v313
        %v465 = vunpack.c.h.b16 %v313
        %v466 = vunpack.c.l.b16 %v314
        %v467 = vunpack.c.h.b16 %v314
        %v468 = vunpack.c.l.b16 %v315
        %v469 = vunpack.c.h.b16 %v315
        %v470 = vunpack.c.l.b16 %v316
        %v471 = vunpack.c.h.b16 %v316
        %v472 = vunpack.c.l.b16 %v317
        %v473 = vunpack.c.h.b16 %v317
        %v474 = vunpack.c.l.b16 %v318
        %v475 = vunpack.c.h.b16 %v318
        %v476 = vunpack.c.l.b16 %v319
        %v477 = vunpack.c.h.b16 %v319
        %v478 = vunpack.c.l.b16 %v320
        %v479 = vunpack.c.h.b16 %v320
        %v480 = vunpack.c.l.b16 %v321
        %v481 = vunpack.c.h.b16 %v321
        %v482 = vunpack.c.l.b16 %v322
        %v483 = vunpack.c.h.b16 %v322
        %v484 = vunpack.c.l.b16 %v323
        %v485 = vunpack.c.h.b16 %v323
        %v486 = vunpack.c.l.b16 %v324
        %v487 = vunpack.c.h.b16 %v324
        %v488 = vunpack.c.l.b16 %v325
        %v489 = vunpack.c.h.b16 %v325
        %v490 = vunpack.c.l.b16 %v326
        %v491 = vunpack.c.h.b16 %v326
        %v492 = vunpack.c.l.b16 %v327
        %v493 = vunpack.c.h.b16 %v327
        %v494 = vunpack.c.l.b16 %v328
        %v495 = vunpack.c.h.b16 %v328
        %v496 = vunpack.c.l.b16 %v329
        %v497 = vunpack.c.h.b16 %v329
        %v498 = vunpack.c.l.b16 %v330
        %v499 = vunpack.c.h.b16 %v330
        %v500 = vunpack.c.l.b16 %v331
        %v501 = vunpack.c.h.b16 %v331
        %v502 = vunpack.c.l.b16 %v332
        %v503 = vunpack.c.h.b16 %v332
        %v504 = vunpack.c.l.b16 %v333
        %v505 = vunpack.c.h.b16 %v333
        %v506 = vunpack.c.l.b16 %v334
        %v507 = vunpack.c.h.b16 %v334
        %v508 = vunpack.c.l.b16 %v335
        %v509 = vunpack.c.h.b16 %v335
        %v510 = vunpack.c.l.b16 %v336
        %v511 = vunpack.c.h.b16 %v336
        %v512 = vunpack.c.l.b16 %v337
        %v513 = vunpack.c.h.b16 %v337
        %v514 = vunpack.c.l.b16 %v338
        %v515 = vunpack.c.h.b16 %v338
        %v516 = vunpack.c.l.b16 %v339
        %v517 = vunpack.c.h.b16 %v339
        %v518 = vunpack.c.l.b16 %v340
        %v519 = vunpack.c.h.b16 %v340
        %v520 = vunpack.c.l.b16 %v341
        %v521 = vunpack.c.h.b16 %v341
        %v522 = vunpack.c.l.b16 %v342
        %v523 = vunpack.c.h.b16 %v342
        %v524 = vunpack.c.l.b16 %v343
        %v525 = vunpack.c.h.b16 %v343
        %v526 = vunpack.c.l.b16 %v344
        %v527 = vunpack.c.h.b16 %v344
        %v528 = vunpack.c.l.b16 %v345
        %v529 = vunpack.c.h.b16 %v345
        %v530 = vunpack.c.l.b16 %v346
        %v531 = vunpack.c.h.b16 %v346
        %v532 = vunpack.c.l.b16 %v347
        %v533 = vunpack.c.h.b16 %v347
        %v534 = vunpack.c.l.b16 %v348
        %v535 = vunpack.c.h.b16 %v348
        %v536 = vunpack.c.l.b16 %v349
        %v537 = vunpack.c.h.b16 %v349
        %v538 = vunpack.c.l.b16 %v350
        %v539 = vunpack.c.h.b16 %v350
        %v540 = vunpack.c.l.b16 %v351
        %v541 = vunpack.c.h.b16 %v351
        %v542 = vunpack.c.l.b16 %v352
        %v543 = vunpack.c.h.b16 %v352
        %v544 = vunpack.c.l.b16 %v353
        %v545 = vunpack.c.h.b16 %v353
        %v546 = vunpack.c.l.b16 %v354
        %v547 = vunpack.c.h.b16 %v354
        %v548 = vunpack.c.l.b16 %v355
        %v549 = vunpack.c.h.b16 %v355
        %v550 = vunpack.c.l.b16 %v356
        %v551 = vunpack.c.h.b16 %v356
        %v552 = vunpack.c.l.b16 %v357
        %v553 = vunpack.c.h.b16 %v357
        %v554 = vunpack.c.l.b16 %v358
        %v555 = vunpack.c.h.b16 %v358
        %v556 = vunpack.c.l.b16 %v359
        %v557 = vunpack.c.h.b16 %v359
        %v558 = vunpack.c.l.b16 %v360
        %v559 = vunpack.c.h.b16 %v360
        %v560 = vpack.c.b16 %v436, %v432
        %v561 = vpack.c.b16 %v437, %v433
        %v562 = vpack.c.b16 %v438, %v434
        %v563 = vpack.c.b16 %v439, %v435
        %v564 = vpack.c.b16 %v444, %v440
        %v565 = vpack.c.b16 %v445, %v441
        %v566 = vpack.c.b16 %v446, %v442
        %v567 = vpack.c.b16 %v447, %v443
        %v568 = vpack.c.b16 %v452, %v448
        %v569 = vpack.c.b16 %v453, %v449
        %v570 = vpack.c.b16 %v454, %v450
        %v571 = vpack.c.b16 %v455, %v451
        %v572 = vpack.c.b16 %v460, %v456
        %v573 = vpack.c.b16 %v461, %v457
        %v574 = vpack.c.b16 %v462, %v458
        %v575 = vpack.c.b16 %v463, %v459
        %v576 = vpack.c.b16 %v468, %v464
        %v577 = vpack.c.b16 %v469, %v465
        %v578 = vpack.c.b16 %v470, %v466
        %v579 = vpack.c.b16 %v471, %v467
        %v580 = vpack.c.b16 %v476, %v472
        %v581 = vpack.c.b16 %v477, %v473
        %v582 = vpack.c.b16 %v478, %v474
        %v583 = vpack.c.b16 %v479, %v475
        %v584 = vpack.c.b16 %v484, %v480
        %v585 = vpack.c.b16 %v485, %v481
        %v586 = vpack.c.b16 %v486, %v482
        %v587 = vpack.c.b16 %v487, %v483
        %v588 = vpack.c.b16 %v492, %v488
        %v589 = vpack.c.b16 %v493, %v489
        %v590 = vpack.c.b16 %v494, %v490
        %v591 = vpack.c.b16 %v495, %v491
        %v592 = vpack.c.b16 %v500, %v496
        %v593 = vpack.c.b16 %v501, %v497
        %v594 = vpack.c.b16 %v502, %v498
        %v595 = vpack.c.b16 %v503, %v499
        %v596 = vpack.c.b16 %v508, %v504
        %v597 = vpack.c.b16 %v509, %v505
        %v598 = vpack.c.b16 %v510, %v506
        %v599 = vpack.c.b16 %v511, %v507
        %v600 = vpack.c.b16 %v516, %v512
        %v601 = vpack.c.b16 %v517, %v513
        %v602 = vpack.c.b16 %v518, %v514
        %v603 = vpack.c.b16 %v519, %v515
        %v604 = vpack.c.b16 %v524, %v520
        %v605 = vpack.c.b16 %v525, %v521
        %v606 = vpack.c.b16 %v526, %v522
        %v607 = vpack.c.b16 %v527, %v523
        %v608 = vpack.c.b16 %v532, %v528
        %v609 = vpack.c.b16 %v533, %v529
        %v610 = vpack.c.b16 %v534, %v530
        %v611 = vpack.c.b16 %v535, %v531
        %v612 = vpack.c.b16 %v540, %v536
        %v613 = vpack.c.b16 %v541, %v537
        %v614 = vpack.c.b16 %v542, %v538
        %v615 = vpack.c.b16 %v543, %v539
        %v616 = vpack.c.b16 %v548, %v544
        %v617 = vpack.c.b16 %v549, %v545
        %v618 = vpack.c.b16 %v550, %v546
        %v619 = vpack.c.b16 %v551, %v547
        %v620 = vpack.c.b16 %v556, %v552
        %v621 = vpack.c.b16 %v557, %v553
        %v622 = vpack.c.b16 %v558, %v554
        %v623 = vpack.c.b16 %v559, %v555
        %688 = vmatprep.subr.bf16.mxu0 %v561
        %689 = vmatpush1.bf16.msra.mxu0 %v560
        %690 = vmatprep.subr.bf16.mxu0 %v565
        %691 = vmatpush1.bf16.msra.mxu0 %v564
        %692 = vmatprep.subr.bf16.mxu0 %v569
        %693 = vmatpush1.bf16.msra.mxu0 %v568
        %694 = vmatprep.subr.bf16.mxu0 %v573
        %695 = vmatpush1.bf16.msra.mxu0 %v572
        %696 = vmatprep.subr.bf16.mxu0 %v577
        %697 = vmatpush1.bf16.msra.mxu0 %v576
        %698 = vmatprep.subr.bf16.mxu0 %v581
        %699 = vmatpush1.bf16.msra.mxu0 %v580
        %700 = vmatprep.subr.bf16.mxu0 %v585
        %701 = vmatpush1.bf16.msra.mxu0 %v584
        %702 = vmatprep.subr.bf16.mxu0 %v589
        %703 = vmatpush1.bf16.msra.mxu0 %v588
        %704 = vmatprep.subr.bf16.mxu0 %v593
        %705 = vmatpush1.bf16.msra.mxu0 %v592
        %706 = vmatprep.subr.bf16.mxu0 %v597
        %707 = vmatpush1.bf16.msra.mxu0 %v596
        %708 = vmatprep.subr.bf16.mxu0 %v601
        %709 = vmatpush1.bf16.msra.mxu0 %v600
        %710 = vmatprep.subr.bf16.mxu0 %v605
        %711 = vmatpush1.bf16.msra.mxu0 %v604
        %712 = vmatprep.subr.bf16.mxu0 %v609
        %713 = vmatpush1.bf16.msra.mxu0 %v608
        %714 = vmatprep.subr.bf16.mxu0 %v613
        %715 = vmatpush1.bf16.msra.mxu0 %v612
        %716 = vmatprep.subr.bf16.mxu0 %v617
        %717 = vmatpush1.bf16.msra.mxu0 %v616
        %718 = vmatprep.subr.bf16.mxu0 %v621
        %719 = vmatpush1.bf16.msra.mxu0 %v620
        %720 = vmatprep.mubr.bf16.mxu0 %v365
        %721 = vmatmul.mubr.bf16.gmra.mrb[0].mxu0 %v364
        %v722 = vpop.f32.mrb[0].mxu0
        %v723 = vadd.f32 0.0, %v722
        %v724 = vpop.f32.mrb[0].mxu0
        %v725 = vadd.f32 0.0, %v724
        %v726 = vpop.f32.mrb[0].mxu0
        %v727 = vpop.f32.mrb[0].mxu0
        %728 = vdwg.mxu0
        %729 = vmatprep.subr.bf16.mxu0 %v563
        %730 = vmatpush1.bf16.msra.mxu0 %v562
        %731 = vmatprep.subr.bf16.mxu0 %v567
        %732 = vmatpush1.bf16.msra.mxu0 %v566
        %733 = vmatprep.subr.bf16.mxu0 %v571
        %734 = vmatpush1.bf16.msra.mxu0 %v570
        %735 = vmatprep.subr.bf16.mxu0 %v575
        %736 = vmatpush1.bf16.msra.mxu0 %v574
        %737 = vmatprep.subr.bf16.mxu0 %v579
        %738 = vmatpush1.bf16.msra.mxu0 %v578
        %739 = vmatprep.subr.bf16.mxu0 %v583
        %740 = vmatpush1.bf16.msra.mxu0 %v582
        %741 = vmatprep.subr.bf16.mxu0 %v587
        %742 = vmatpush1.bf16.msra.mxu0 %v586
        %743 = vmatprep.subr.bf16.mxu0 %v591
        %744 = vmatpush1.bf16.msra.mxu0 %v590
        %745 = vmatprep.subr.bf16.mxu0 %v595
        %746 = vmatpush1.bf16.msra.mxu0 %v594
        %747 = vmatprep.subr.bf16.mxu0 %v599
        %748 = vmatpush1.bf16.msra.mxu0 %v598
        %749 = vmatprep.subr.bf16.mxu0 %v603
        %750 = vmatpush1.bf16.msra.mxu0 %v602
        %751 = vmatprep.subr.bf16.mxu0 %v607
        %752 = vmatpush1.bf16.msra.mxu0 %v606
        %753 = vmatprep.subr.bf16.mxu0 %v611
        %754 = vmatpush1.bf16.msra.mxu0 %v610
        %755 = vmatprep.subr.bf16.mxu0 %v615
        %756 = vmatpush1.bf16.msra.mxu0 %v614
        %757 = vmatprep.subr.bf16.mxu0 %v619
        %758 = vmatpush1.bf16.msra.mxu0 %v618
        %759 = vmatprep.subr.bf16.mxu0 %v623
        %760 = vmatpush1.bf16.msra.mxu0 %v622
        %761 = vmatprep.mubr.bf16.mxu0 %v365
        %762 = vmatmul.mubr.bf16.gmra.mrb[0].mxu0 %v364
        %v763 = vpop.f32.mrb[0].mxu0
        %v764 = vadd.f32 0.0, %v763
        %v765 = vpop.f32.mrb[0].mxu0
        %v766 = vadd.f32 0.0, %v765
        %v767 = vpop.f32.mrb[0].mxu0
        %v768 = vpop.f32.mrb[0].mxu0
        %769 = vdwg.mxu0
        %v770 = vadd.f32 %v292, %v723
        %v771 = vadd.f32 %v293, %v725
        %v772 = vadd.f32 %v294, %v764
        %v773 = vadd.f32 %v295, %v766
        %774 = vst [vmem:[#allocation2] sm:$0xff] %v770
        %775 = vst [vmem:[#allocation2 + $0x8] sm:$0xff] %v771
        %776 = vst [vmem:[#allocation2 + $0x10] sm:$0xff] %v772
        %777 = vst [vmem:[#allocation2 + $0x18] sm:$0xff] %v773
        %p778 = scmp.eq.s32.totalorder %s28, 2
        // Predicated region
        $region49: #{tpu_custom_call.1} parent=31 // pred_check
          %p779 = pneg %p778
        $region50: #{tpu_custom_call.1} parent=31 // pred_check_branch
          %781 = sbr.rel (%p779) target = $region52
        $region51: #{tpu_custom_call.1} parent=31 // pred_region
          %v782 = vld [vmem:[#allocation2] sm:$0xff]
          %v783 = vld [vmem:[#allocation2 + $0x8] sm:$0xff]
          %v784 = vld [vmem:[#allocation2 + $0x10] sm:$0xff]
          %v785 = vld [vmem:[#allocation2 + $0x18] sm:$0xff]
          %v786 = vld [vmem:[%s246] sm:$0xf]
          %v788 = vlaneseq
          %v789 = vshrl.u32 %v788, 7
          %v790 = vsub.s32 0, %v789
          %v791 = vrot.slane %v786, %v790
          %v792 = vlaneseq
          %v793 = vshrl.u32 %v792, 7
          %v794 = vsub.s32 1, %v793
          %v795 = vrot.slane %v786, %v794
          %v796 = vlaneseq
          %v797 = vshrl.u32 %v796, 7
          %v798 = vsub.s32 2, %v797
          %v799 = vrot.slane %v786, %v798
          %v800 = vlaneseq
          %v801 = vshrl.u32 %v800, 7
          %v802 = vsub.s32 3, %v801
          %v803 = vrot.slane %v786, %v802
          %v808 = vadd.f32 %v782, %v791
          %v809 = vadd.f32 %v783, %v795
          %v810 = vadd.f32 %v784, %v799
          %v811 = vadd.f32 %v785, %v803
          %812 = vst [vmem:[%s278] sm:$0xff] %v808
          %813 = vst [vmem:[%s278 + $0x8] sm:$0xff] %v809
          %814 = vst [vmem:[%s278 + $0x10] sm:$0xff] %v810
          %815 = vst [vmem:[%s278 + $0x18] sm:$0xff] %v811
        $region52: #{tpu_custom_call.1} parent=31 // pred_fallthru
          _
        %s816 = sand.u32 %s123, 1
        %s817 = scalar_lea.sflag [#allocation5], %s816
        %s818 = sand.u32 %s123, 1
        %s819 = smul.addr %s818, 32
        %s820 = scalar_lea.vmem [#allocation9], %s819
        // Predicated region
        $region53: #{tpu_custom_call.1} parent=31 // pred_check
          %p821 = pneg %p133
        $region54: #{tpu_custom_call.1} parent=31 // pred_check_branch
          %823 = sbr.rel (%p821) target = $region56
        $region55: #{tpu_custom_call.1} parent=31 // pred_region
          %s824 = smul.u32 4, %s27
          %s826 = ssub.s32 512, 512
          %827 = vsyncadd %s817, %s826
          %s828 = smul.addr %s824, 128
          %s829 = scalar_lea.hbm %s3, %s828
          %s831 = sshll.u32 %s820, 4
          %s832 = int_to_ptr.vmem [resolvable:$true] %s831
          %834 = dma.vmem_to_hbm [thread:$0]  %s832, 512, %s829, %s817
        $region56: #{tpu_custom_call.1} parent=31 // pred_fallthru
          _
      $region32: #{tpu_custom_call.1} parent=5 // pred_fallthru
        _
      %p835 = scmp.le.s32.totalorder 2, %s18
      // Predicated region
      $region57: #{tpu_custom_call.1} parent=5 // pred_check
        %p836 = pneg %p835
      $region58: #{tpu_custom_call.1} parent=5 // pred_check_branch
        %838 = sbr.rel (%p836) target = $region60
      $region59: #{tpu_custom_call.1} parent=5 // pred_region
        %s839 = ssub.s32 %s18, 2
        // Predicated region
        $region61: #{tpu_custom_call.1} parent=59 // pred_check
          %p840 = pneg %p139
        $region62: #{tpu_custom_call.1} parent=59 // pred_check_branch
          %842 = sbr.rel (%p840) target = $region64
        $region63: #{tpu_custom_call.1} parent=59 // pred_region
          %s843 = sand.u32 %s124, 1
          %s844 = scalar_lea.sflag [#allocation5], %s843
          %s845 = sand.u32 %s124, 1
          %s846 = smul.addr %s845, 32
          %s847 = scalar_lea.vmem [#allocation9], %s846
          %848 = dma.done %s844, 512
        $region64: #{tpu_custom_call.1} parent=59 // pred_fallthru
          _
      $region60: #{tpu_custom_call.1} parent=5 // pred_fallthru
        _
    $region6: #{tpu_custom_call.1} parent=1 // loop_footer
      %s22 = sadd.s32 1, %s18
    $region7: #{tpu_custom_call.1} parent=1 // loop_footer_branch
      %17 = sbr.rel target = $region3
    $region8: #{tpu_custom_call.1} parent=1 // loop_exit
      _
    %849 = vsyncpa [#allocation4], 1
    %s850 = scalar_lea.sflag [#allocation4], 1
    %851 = vsyncpa %s850, 1
    %852 = vsyncpa [#allocation7], 1
    %s853 = scalar_lea.sflag [#allocation7], 1
    %854 = vsyncpa %s853, 1
    %855 = vsyncpa [#allocation5], 1
    %s856 = scalar_lea.sflag [#allocation5], 1
    %857 = vsyncpa %s856, 1

</llo_original>
